<compile_context>
chip_gen: v6e
topology: v6e:2x2x1
jax: 0.10.0
libtpu: 0.0.40
codegen_flags: <defaults>
</compile_context>

<pallas_src>
import functools
import math

import jax
import jax.numpy as jnp
from jax.experimental import pallas as pl
from jax.experimental.pallas import tpu as pltpu

_BN_EPS = 1e-5
_LOG_SQRT_2PI = 0.5 * math.log(2.0 * math.pi)
_LANES = 128  # packed slab width; all feature dims are zero-padded to this


def _batch_norm(x, gamma, beta):
    """BatchNorm1d, training-mode semantics (batch stats, biased variance).

    gamma/beta are zero-padded beyond the layer's real width, which also
    zeroes out any garbage living in the padded lanes of x.
    """
    mean = jnp.mean(x, axis=0, keepdims=True)
    xc = x - mean                                  # reused for var and xhat
    var = jnp.mean(xc * xc, axis=0, keepdims=True)
    scale = gamma * jax.lax.rsqrt(var + _BN_EPS)   # fold gamma into the scale
    return xc * scale + beta


def ppo_actor_kernel(x_ref, vecs_ref, wts_ref, alpha_ref, out_ref, *,
                     action_size, noise_off, std_scale):
    A = action_size
    alpha = alpha_ref[0]                 # PReLU slope, read from SMEM

    def prelu(v):
        return jnp.where(v > 0, v, alpha * v)

    x = x_ref[...]                       # (B, 128): [state | noise | 0 pad]
    vecs = vecs_ref[...]                 # (16, 128): packed row vectors (f32)
    B = x.shape[0]

    # ---- MLP trunk: BN -> Linear -> PReLU (x3), BN -> Linear -> tanh ----
    # Everything runs at padded width 128; zero-padded gamma/bias/weights make
    # the padded lanes exact zeros through every layer.
    def layer(h, li, act):
        g = vecs[3 * li + 0:3 * li + 1, :]
        b = vecs[3 * li + 1:3 * li + 2, :]
        bias = vecs[3 * li + 2:3 * li + 3, :]
        hb = _batch_norm(h, g, b).astype(jnp.bfloat16)   # bf16 MXU inputs
        w = wts_ref[li]                                  # (128, 128) bf16
        y = jnp.dot(hb, w, preferred_element_type=jnp.float32) + bias
        return act(y)

    h = layer(x, 0, prelu)
    h = layer(h, 1, prelu)
    h = layer(h, 2, prelu)
    action_mean = layer(h, 3, jnp.tanh)                  # real cols [0:A]

    # ---- Normal(action_mean, hardtanh(std, 0.05, 0.5*std_scale)) ----
    # NOTE: if std_scale < 0.1 the clip upper bound is below the lower bound;
    # the PyTorch hardtanh is equally ill-defined there (jnp.clip returns the
    # upper bound).
    std = vecs[12:13, :A]                                # (1, A)
    scale = jnp.clip(std, 0.05, 0.5 * std_scale)         # (1, A)
    log_scale = jnp.log(scale)                           # (1, A)

    mean_a = action_mean[:, :A]                          # (B, A)
    noise = x[:, noise_off:noise_off + A]                # (B, A) eps ~ N(0,1)
    action = mean_a + noise * scale                      # dist.sample()

    # log_prob(sample) = -0.5*eps^2 - log(scale) - log(sqrt(2*pi)), sum over A
    sum_log_scale = jnp.sum(log_scale)
    logp = (-0.5 * jnp.sum(noise * noise, axis=-1, keepdims=True)
            - (sum_log_scale + A * _LOG_SQRT_2PI))       # (B, 1)

    # entropy is batch-independent: mean_A(0.5 + log(sqrt(2*pi)) + log(scale))
    ent = jnp.mean(0.5 + _LOG_SQRT_2PI + log_scale)      # scalar
    ent_col = jnp.zeros((B, 1), jnp.float32) + ent       # (B, 1)

    # Single lane-dense packed output: [mean | action | logp | ent | 0 pad]
    pad = jnp.zeros((B, _LANES - 2 * A - 2), jnp.float32)
    out_ref[...] = jnp.concatenate([mean_a, action, logp, ent_col, pad],
                                   axis=-1)


def ppo_actor_forward(s, params, noise, std_scale=1.0):
    B, S = s.shape
    H1 = params["w1"].shape[1]
    H2 = params["w2"].shape[1]
    H3 = params["w3"].shape[1]
    A = params["w4"].shape[1]
    assert max(S, H1, H2, H3, A) <= _LANES, "feature dims must fit one slab"
    noise_off = S
    assert noise_off + A <= _LANES and 2 * A + 2 <= _LANES

    # --- single lane-dense activation slab: [state | noise | zero pad] ---
    x_in = jnp.zeros((B, _LANES), jnp.float32)
    x_in = x_in.at[:, :S].set(s.astype(jnp.float32))
    x_in = x_in.at[:, noise_off:noise_off + A].set(noise.astype(jnp.float32))

    # --- all (1, n) row vectors packed into one (16, 128) f32 array ---
    def row(v, n):
        return jnp.zeros((_LANES,), jnp.float32).at[:n].set(
            jnp.reshape(v, (-1,)).astype(jnp.float32))

    vecs = jnp.stack([
        row(params["g1"], S), row(params["b1"], S), row(params["bias1"], H1),
        row(params["g2"], H1), row(params["b2"], H1), row(params["bias2"], H2),
        row(params["g3"], H2), row(params["b3"], H2), row(params["bias3"], H3),
        row(params["g4"], H3), row(params["b4"], H3), row(params["bias4"], A),
        row(params["std"], A),
        jnp.zeros((_LANES,), jnp.float32),
        jnp.zeros((_LANES,), jnp.float32),
        jnp.zeros((_LANES,), jnp.float32),
    ])

    # --- all four weight matrices zero-padded to (128,128), stacked, bf16 ---
    def wpad(w):
        out = jnp.zeros((_LANES, _LANES), jnp.float32)
        return out.at[:w.shape[0], :w.shape[1]].set(w).astype(jnp.bfloat16)

    wts = jnp.stack([wpad(params["w1"]), wpad(params["w2"]),
                     wpad(params["w3"]), wpad(params["w4"])])

    alpha = jnp.reshape(params["alpha"], (1,)).astype(jnp.float32)

    kernel = functools.partial(ppo_actor_kernel, action_size=A,
                               noise_off=noise_off,
                               std_scale=float(std_scale))

    out = pl.pallas_call(
        kernel,
        out_shape=jax.ShapeDtypeStruct((B, _LANES), jnp.float32),
        grid_spec=pltpu.PrefetchScalarGridSpec(
            num_scalar_prefetch=0,
            grid=(1,),
            in_specs=[
                pl.BlockSpec((B, _LANES), lambda i: (0, 0)),
                pl.BlockSpec((16, _LANES), lambda i: (0, 0)),
                pl.BlockSpec((4, _LANES, _LANES), lambda i: (0, 0, 0)),
                pl.BlockSpec(memory_space=pltpu.MemorySpace.SMEM),
            ],
            out_specs=pl.BlockSpec((B, _LANES), lambda i: (0, 0)),
        ),
        compiler_params=pltpu.CompilerParams(
            dimension_semantics=("arbitrary",)),
    )(x_in, vecs, wts, alpha)

    # Slice the packed slab apart; match PyTorch return shapes/order.
    action_mean = out[:, :A]
    resampled = out[:, A:2 * A]
    log_prob = out[:, 2 * A]
    entropy = out[:, 2 * A + 1]
    return (log_prob, action_mean, resampled, entropy)


def init_params(key, state_size, hidden_sizes, action_size):
    h1, h2, h3 = hidden_sizes
    ks = jax.random.split(key, 8)

    def lin(kw, kb, n_in, n_out, w_lim, b_lim):
        # weight stored [in, out] (transposed vs. PyTorch's [out, in])
        w = jax.random.uniform(kw, (n_in, n_out), jnp.float32, -w_lim, w_lim)
        b = jax.random.uniform(kb, (1, n_out), jnp.float32, -b_lim, b_lim)
        return w, b

    # weights_init_lim uses 1/sqrt(out_features); biases keep default 1/sqrt(in)
    w1, bias1 = lin(ks[0], ks[1], state_size, h1, 1.0 / math.sqrt(h1),
                    1.0 / math.sqrt(state_size))
    w2, bias2 = lin(ks[2], ks[3], h1, h2, 1.0 / math.sqrt(h2),
                    1.0 / math.sqrt(h1))
    w3, bias3 = lin(ks[4], ks[5], h2, h3, 1.0 / math.sqrt(h3),
                    1.0 / math.sqrt(h2))
    w4, bias4 = lin(ks[6], ks[7], h3, action_size, 0.001,
                    1.0 / math.sqrt(h3))

    params = dict(
        g1=jnp.ones((1, state_size), jnp.float32), b1=jnp.zeros((1, state_size), jnp.float32),
        w1=w1, bias1=bias1,
        g2=jnp.ones((1, h1), jnp.float32), b2=jnp.zeros((1, h1), jnp.float32),
        w2=w2, bias2=bias2,
        g3=jnp.ones((1, h2), jnp.float32), b3=jnp.zeros((1, h2), jnp.float32),
        w3=w3, bias3=bias3,
        g4=jnp.ones((1, h3), jnp.float32), b4=jnp.zeros((1, h3), jnp.float32),
        w4=w4, bias4=bias4,
        alpha=jnp.full((1, 1), 0.25, jnp.float32),              # PReLU default
        std=jnp.full((1, action_size), 0.3, jnp.float32),       # self.std
    )
    return params


if __name__ == "__main__":
    B, STATE, HIDDEN, ACTION = 8, 32, (64, 64, 32), 4

    key = jax.random.PRNGKey(0)
    k_params, k_state, k_noise = jax.random.split(key, 3)

    params = init_params(k_params, STATE, HIDDEN, ACTION)
    s = jax.random.normal(k_state, (B, STATE), dtype=jnp.float32)
    # dist.sample() standard-normal noise generated outside the kernel (glue),
    # applied inside as mean + scale * eps.
    noise = jax.random.normal(k_noise, (B, ACTION), dtype=jnp.float32)

    log_prob, action_mean, resampled_action, entropy = jax.block_until_ready(
        ppo_actor_forward(s, params, noise, std_scale=1.0))

    assert log_prob.shape == (B,)
    assert action_mean.shape == (B, ACTION)
    assert resampled_action.shape == (B, ACTION)
    assert entropy.shape == (B,)
    assert bool(jnp.all(jnp.isfinite(log_prob)))
    assert bool(jnp.all(jnp.isfinite(action_mean)))
    assert bool(jnp.all(jnp.isfinite(resampled_action)))
    assert bool(jnp.all(jnp.isfinite(entropy)))
    print("KERNEL_OK")
</pallas_src>

<mosaic_0001>
module attributes {stable_mosaic.version = 11 : i64} {
  func.func @ppo_actor_kernel(%arg0: i32, %arg1: memref<8x128xf32, #tpu.memory_space<vmem>>, %arg2: memref<16x128xf32, #tpu.memory_space<vmem>>, %arg3: memref<4x128x128xbf16, #tpu.memory_space<vmem>>, %arg4: memref<1xf32, #tpu.memory_space<smem>>, %arg5: memref<8x128xf32, #tpu.memory_space<vmem>>) attributes {dimension_semantics = [#tpu.dimension_semantics<arbitrary>], iteration_bounds = array<i64: 1>, scalar_prefetch = 0 : i64, scratch_operands = 0 : i64, tpu.core_type = #tpu.core_type<tc>, window_params = [{pipeline_mode = #tpu.pipeline_mode<synchronous>, transform_indices = @transform_0, window_bounds = array<i64: 8, 128>}, {pipeline_mode = #tpu.pipeline_mode<synchronous>, transform_indices = @transform_1, window_bounds = array<i64: 16, 128>}, {pipeline_mode = #tpu.pipeline_mode<synchronous>, transform_indices = @transform_2, window_bounds = array<i64: 4, 128, 128>}, {transform_indices = @transform_3, window_bounds = array<i64: 1>}, {pipeline_mode = #tpu.pipeline_mode<synchronous>, transform_indices = @transform_4, window_bounds = array<i64: 8, 128>}]} {
    %c0 = arith.constant 0 : index
    %0 = memref.load %arg4[%c0] : memref<1xf32, #tpu.memory_space<smem>>
    %c0_0 = arith.constant 0 : index
    %c0_1 = arith.constant 0 : index
    %1 = vector.load %arg1[%c0_0, %c0_1] : memref<8x128xf32, #tpu.memory_space<vmem>>, vector<8x128xf32>
    %c0_2 = arith.constant 0 : index
    %c0_3 = arith.constant 0 : index
    %2 = vector.load %arg2[%c0_2, %c0_3] : memref<16x128xf32, #tpu.memory_space<vmem>>, vector<16x128xf32>
    %3 = vector.extract_strided_slice %2 {offsets = [0, 0], sizes = [1, 128], strides = [1, 1]} : vector<16x128xf32> to vector<1x128xf32>
    %4 = vector.extract_strided_slice %2 {offsets = [1, 0], sizes = [1, 128], strides = [1, 1]} : vector<16x128xf32> to vector<1x128xf32>
    %5 = vector.extract_strided_slice %2 {offsets = [2, 0], sizes = [1, 128], strides = [1, 1]} : vector<16x128xf32> to vector<1x128xf32>
    %cst = arith.constant dense<0.000000e+00> : vector<128xf32>
    %6 = vector.multi_reduction <add>, %1, %cst [0] : vector<8x128xf32> to vector<128xf32>
    %7 = vector.shape_cast %6 : vector<128xf32> to vector<1x128xf32>
    %cst_4 = arith.constant 8.000000e+00 : f32
    %8 = vector.broadcast %cst_4 : f32 to vector<1x128xf32>
    %9 = arith.divf %7, %8 : vector<1x128xf32>
    %10 = vector.broadcast %9 : vector<1x128xf32> to vector<8x128xf32>
    %11 = arith.subf %1, %10 : vector<8x128xf32>
    %12 = arith.mulf %11, %11 : vector<8x128xf32>
    %cst_5 = arith.constant dense<0.000000e+00> : vector<128xf32>
    %13 = vector.multi_reduction <add>, %12, %cst_5 [0] : vector<8x128xf32> to vector<128xf32>
    %14 = vector.shape_cast %13 : vector<128xf32> to vector<1x128xf32>
    %cst_6 = arith.constant 8.000000e+00 : f32
    %15 = vector.broadcast %cst_6 : f32 to vector<1x128xf32>
    %16 = arith.divf %14, %15 : vector<1x128xf32>
    %cst_7 = arith.constant 9.99999974E-6 : f32
    %17 = vector.broadcast %cst_7 : f32 to vector<1x128xf32>
    %18 = arith.addf %16, %17 : vector<1x128xf32>
    %19 = math.rsqrt %18 : vector<1x128xf32>
    %20 = arith.mulf %3, %19 : vector<1x128xf32>
    %21 = vector.broadcast %20 : vector<1x128xf32> to vector<8x128xf32>
    %22 = arith.mulf %11, %21 : vector<8x128xf32>
    %23 = vector.broadcast %4 : vector<1x128xf32> to vector<8x128xf32>
    %24 = arith.addf %22, %23 : vector<8x128xf32>
    %25 = arith.truncf %24 : vector<8x128xf32> to vector<8x128xbf16>
    %c0_8 = arith.constant 0 : index
    %c0_9 = arith.constant 0 : index
    %c0_10 = arith.constant 0 : index
    %26 = vector.load %arg3[%c0_8, %c0_9, %c0_10] : memref<4x128x128xbf16, #tpu.memory_space<vmem>>, vector<1x128x128xbf16>
    %27 = vector.shape_cast %26 : vector<1x128x128xbf16> to vector<128x128xbf16>
    %cst_11 = arith.constant dense<0.000000e+00> : vector<8x128xf32>
    %28 = tpu.matmul %25, %27, %cst_11 {dimension_numbers = #tpu.dot_dimension_numbers<[1], [0], [0], [1], [0, 0, 1, 1], [], []>} : vector<8x128xbf16>, vector<128x128xbf16>, vector<8x128xf32> -> vector<8x128xf32>
    %29 = vector.broadcast %5 : vector<1x128xf32> to vector<8x128xf32>
    %30 = arith.addf %28, %29 : vector<8x128xf32>
    %cst_12 = arith.constant 0.000000e+00 : f32
    %31 = vector.broadcast %cst_12 : f32 to vector<8x128xf32>
    %32 = arith.cmpf ogt, %30, %31 : vector<8x128xf32>
    %33 = vector.broadcast %0 : f32 to vector<8x128xf32>
    %34 = arith.mulf %33, %30 : vector<8x128xf32>
    %35 = arith.select %32, %30, %34 : vector<8x128xi1>, vector<8x128xf32>
    %36 = vector.extract_strided_slice %2 {offsets = [3, 0], sizes = [1, 128], strides = [1, 1]} : vector<16x128xf32> to vector<1x128xf32>
    %37 = vector.extract_strided_slice %2 {offsets = [4, 0], sizes = [1, 128], strides = [1, 1]} : vector<16x128xf32> to vector<1x128xf32>
    %38 = vector.extract_strided_slice %2 {offsets = [5, 0], sizes = [1, 128], strides = [1, 1]} : vector<16x128xf32> to vector<1x128xf32>
    %cst_13 = arith.constant dense<0.000000e+00> : vector<128xf32>
    %39 = vector.multi_reduction <add>, %35, %cst_13 [0] : vector<8x128xf32> to vector<128xf32>
    %40 = vector.shape_cast %39 : vector<128xf32> to vector<1x128xf32>
    %cst_14 = arith.constant 8.000000e+00 : f32
    %41 = vector.broadcast %cst_14 : f32 to vector<1x128xf32>
    %42 = arith.divf %40, %41 : vector<1x128xf32>
    %43 = vector.broadcast %42 : vector<1x128xf32> to vector<8x128xf32>
    %44 = arith.subf %35, %43 : vector<8x128xf32>
    %45 = arith.mulf %44, %44 : vector<8x128xf32>
    %cst_15 = arith.constant dense<0.000000e+00> : vector<128xf32>
    %46 = vector.multi_reduction <add>, %45, %cst_15 [0] : vector<8x128xf32> to vector<128xf32>
    %47 = vector.shape_cast %46 : vector<128xf32> to vector<1x128xf32>
    %cst_16 = arith.constant 8.000000e+00 : f32
    %48 = vector.broadcast %cst_16 : f32 to vector<1x128xf32>
    %49 = arith.divf %47, %48 : vector<1x128xf32>
    %cst_17 = arith.constant 9.99999974E-6 : f32
    %50 = vector.broadcast %cst_17 : f32 to vector<1x128xf32>
    %51 = arith.addf %49, %50 : vector<1x128xf32>
    %52 = math.rsqrt %51 : vector<1x128xf32>
    %53 = arith.mulf %36, %52 : vector<1x128xf32>
    %54 = vector.broadcast %53 : vector<1x128xf32> to vector<8x128xf32>
    %55 = arith.mulf %44, %54 : vector<8x128xf32>
    %56 = vector.broadcast %37 : vector<1x128xf32> to vector<8x128xf32>
    %57 = arith.addf %55, %56 : vector<8x128xf32>
    %58 = arith.truncf %57 : vector<8x128xf32> to vector<8x128xbf16>
    %c1 = arith.constant 1 : index
    %c0_18 = arith.constant 0 : index
    %c0_19 = arith.constant 0 : index
    %59 = vector.load %arg3[%c1, %c0_18, %c0_19] : memref<4x128x128xbf16, #tpu.memory_space<vmem>>, vector<1x128x128xbf16>
    %60 = vector.shape_cast %59 : vector<1x128x128xbf16> to vector<128x128xbf16>
    %cst_20 = arith.constant dense<0.000000e+00> : vector<8x128xf32>
    %61 = tpu.matmul %58, %60, %cst_20 {dimension_numbers = #tpu.dot_dimension_numbers<[1], [0], [0], [1], [0, 0, 1, 1], [], []>} : vector<8x128xbf16>, vector<128x128xbf16>, vector<8x128xf32> -> vector<8x128xf32>
    %62 = vector.broadcast %38 : vector<1x128xf32> to vector<8x128xf32>
    %63 = arith.addf %61, %62 : vector<8x128xf32>
    %cst_21 = arith.constant 0.000000e+00 : f32
    %64 = vector.broadcast %cst_21 : f32 to vector<8x128xf32>
    %65 = arith.cmpf ogt, %63, %64 : vector<8x128xf32>
    %66 = vector.broadcast %0 : f32 to vector<8x128xf32>
    %67 = arith.mulf %66, %63 : vector<8x128xf32>
    %68 = arith.select %65, %63, %67 : vector<8x128xi1>, vector<8x128xf32>
    %69 = vector.extract_strided_slice %2 {offsets = [6, 0], sizes = [1, 128], strides = [1, 1]} : vector<16x128xf32> to vector<1x128xf32>
    %70 = vector.extract_strided_slice %2 {offsets = [7, 0], sizes = [1, 128], strides = [1, 1]} : vector<16x128xf32> to vector<1x128xf32>
    %71 = vector.extract_strided_slice %2 {offsets = [8, 0], sizes = [1, 128], strides = [1, 1]} : vector<16x128xf32> to vector<1x128xf32>
    %cst_22 = arith.constant dense<0.000000e+00> : vector<128xf32>
    %72 = vector.multi_reduction <add>, %68, %cst_22 [0] : vector<8x128xf32> to vector<128xf32>
    %73 = vector.shape_cast %72 : vector<128xf32> to vector<1x128xf32>
    %cst_23 = arith.constant 8.000000e+00 : f32
    %74 = vector.broadcast %cst_23 : f32 to vector<1x128xf32>
    %75 = arith.divf %73, %74 : vector<1x128xf32>
    %76 = vector.broadcast %75 : vector<1x128xf32> to vector<8x128xf32>
    %77 = arith.subf %68, %76 : vector<8x128xf32>
    %78 = arith.mulf %77, %77 : vector<8x128xf32>
    %cst_24 = arith.constant dense<0.000000e+00> : vector<128xf32>
    %79 = vector.multi_reduction <add>, %78, %cst_24 [0] : vector<8x128xf32> to vector<128xf32>
    %80 = vector.shape_cast %79 : vector<128xf32> to vector<1x128xf32>
    %cst_25 = arith.constant 8.000000e+00 : f32
    %81 = vector.broadcast %cst_25 : f32 to vector<1x128xf32>
    %82 = arith.divf %80, %81 : vector<1x128xf32>
    %cst_26 = arith.constant 9.99999974E-6 : f32
    %83 = vector.broadcast %cst_26 : f32 to vector<1x128xf32>
    %84 = arith.addf %82, %83 : vector<1x128xf32>
    %85 = math.rsqrt %84 : vector<1x128xf32>
    %86 = arith.mulf %69, %85 : vector<1x128xf32>
    %87 = vector.broadcast %86 : vector<1x128xf32> to vector<8x128xf32>
    %88 = arith.mulf %77, %87 : vector<8x128xf32>
    %89 = vector.broadcast %70 : vector<1x128xf32> to vector<8x128xf32>
    %90 = arith.addf %88, %89 : vector<8x128xf32>
    %91 = arith.truncf %90 : vector<8x128xf32> to vector<8x128xbf16>
    %c2 = arith.constant 2 : index
    %c0_27 = arith.constant 0 : index
    %c0_28 = arith.constant 0 : index
    %92 = vector.load %arg3[%c2, %c0_27, %c0_28] : memref<4x128x128xbf16, #tpu.memory_space<vmem>>, vector<1x128x128xbf16>
    %93 = vector.shape_cast %92 : vector<1x128x128xbf16> to vector<128x128xbf16>
    %cst_29 = arith.constant dense<0.000000e+00> : vector<8x128xf32>
    %94 = tpu.matmul %91, %93, %cst_29 {dimension_numbers = #tpu.dot_dimension_numbers<[1], [0], [0], [1], [0, 0, 1, 1], [], []>} : vector<8x128xbf16>, vector<128x128xbf16>, vector<8x128xf32> -> vector<8x128xf32>
    %95 = vector.broadcast %71 : vector<1x128xf32> to vector<8x128xf32>
    %96 = arith.addf %94, %95 : vector<8x128xf32>
    %cst_30 = arith.constant 0.000000e+00 : f32
    %97 = vector.broadcast %cst_30 : f32 to vector<8x128xf32>
    %98 = arith.cmpf ogt, %96, %97 : vector<8x128xf32>
    %99 = vector.broadcast %0 : f32 to vector<8x128xf32>
    %100 = arith.mulf %99, %96 : vector<8x128xf32>
    %101 = arith.select %98, %96, %100 : vector<8x128xi1>, vector<8x128xf32>
    %102 = vector.extract_strided_slice %2 {offsets = [9, 0], sizes = [1, 128], strides = [1, 1]} : vector<16x128xf32> to vector<1x128xf32>
    %103 = vector.extract_strided_slice %2 {offsets = [10, 0], sizes = [1, 128], strides = [1, 1]} : vector<16x128xf32> to vector<1x128xf32>
    %104 = vector.extract_strided_slice %2 {offsets = [11, 0], sizes = [1, 128], strides = [1, 1]} : vector<16x128xf32> to vector<1x128xf32>
    %cst_31 = arith.constant dense<0.000000e+00> : vector<128xf32>
    %105 = vector.multi_reduction <add>, %101, %cst_31 [0] : vector<8x128xf32> to vector<128xf32>
    %106 = vector.shape_cast %105 : vector<128xf32> to vector<1x128xf32>
    %cst_32 = arith.constant 8.000000e+00 : f32
    %107 = vector.broadcast %cst_32 : f32 to vector<1x128xf32>
    %108 = arith.divf %106, %107 : vector<1x128xf32>
    %109 = vector.broadcast %108 : vector<1x128xf32> to vector<8x128xf32>
    %110 = arith.subf %101, %109 : vector<8x128xf32>
    %111 = arith.mulf %110, %110 : vector<8x128xf32>
    %cst_33 = arith.constant dense<0.000000e+00> : vector<128xf32>
    %112 = vector.multi_reduction <add>, %111, %cst_33 [0] : vector<8x128xf32> to vector<128xf32>
    %113 = vector.shape_cast %112 : vector<128xf32> to vector<1x128xf32>
    %cst_34 = arith.constant 8.000000e+00 : f32
    %114 = vector.broadcast %cst_34 : f32 to vector<1x128xf32>
    %115 = arith.divf %113, %114 : vector<1x128xf32>
    %cst_35 = arith.constant 9.99999974E-6 : f32
    %116 = vector.broadcast %cst_35 : f32 to vector<1x128xf32>
    %117 = arith.addf %115, %116 : vector<1x128xf32>
    %118 = math.rsqrt %117 : vector<1x128xf32>
    %119 = arith.mulf %102, %118 : vector<1x128xf32>
    %120 = vector.broadcast %119 : vector<1x128xf32> to vector<8x128xf32>
    %121 = arith.mulf %110, %120 : vector<8x128xf32>
    %122 = vector.broadcast %103 : vector<1x128xf32> to vector<8x128xf32>
    %123 = arith.addf %121, %122 : vector<8x128xf32>
    %124 = arith.truncf %123 : vector<8x128xf32> to vector<8x128xbf16>
    %c3 = arith.constant 3 : index
    %c0_36 = arith.constant 0 : index
    %c0_37 = arith.constant 0 : index
    %125 = vector.load %arg3[%c3, %c0_36, %c0_37] : memref<4x128x128xbf16, #tpu.memory_space<vmem>>, vector<1x128x128xbf16>
    %126 = vector.shape_cast %125 : vector<1x128x128xbf16> to vector<128x128xbf16>
    %cst_38 = arith.constant dense<0.000000e+00> : vector<8x128xf32>
    %127 = tpu.matmul %124, %126, %cst_38 {dimension_numbers = #tpu.dot_dimension_numbers<[1], [0], [0], [1], [0, 0, 1, 1], [], []>} : vector<8x128xbf16>, vector<128x128xbf16>, vector<8x128xf32> -> vector<8x128xf32>
    %128 = vector.broadcast %104 : vector<1x128xf32> to vector<8x128xf32>
    %129 = arith.addf %127, %128 : vector<8x128xf32>
    %130 = math.tanh %129 : vector<8x128xf32>
    %131 = vector.extract_strided_slice %2 {offsets = [12, 0], sizes = [1, 4], strides = [1, 1]} : vector<16x128xf32> to vector<1x4xf32>
    %cst_39 = arith.constant 5.000000e-02 : f32
    %cst_40 = arith.constant 5.000000e-01 : f32
    %132 = vector.broadcast %cst_39 : f32 to vector<1x4xf32>
    %133 = arith.maximumf %132, %131 : vector<1x4xf32>
    %134 = vector.broadcast %cst_40 : f32 to vector<1x4xf32>
    %135 = arith.minimumf %134, %133 : vector<1x4xf32>
    %136 = math.log %135 : vector<1x4xf32>
    %137 = vector.extract_strided_slice %130 {offsets = [0, 0], sizes = [8, 4], strides = [1, 1]} : vector<8x128xf32> to vector<8x4xf32>
    %138 = vector.extract_strided_slice %1 {offsets = [0, 32], sizes = [8, 4], strides = [1, 1]} : vector<8x128xf32> to vector<8x4xf32>
    %139 = vector.broadcast %135 : vector<1x4xf32> to vector<8x4xf32>
    %140 = arith.mulf %138, %139 : vector<8x4xf32>
    %141 = arith.addf %137, %140 : vector<8x4xf32>
    %142 = vector.shape_cast %136 : vector<1x4xf32> to vector<1x1x4xf32>
    %cst_41 = arith.constant dense<0.000000e+00> : vector<1xf32>
    %143 = vector.multi_reduction <add>, %142, %cst_41 [1, 2] : vector<1x1x4xf32> to vector<1xf32>
    %144 = vector.shape_cast %143 : vector<1xf32> to vector<1x1x1xf32>
    %145 = vector.extract %144[0, 0, 0] : f32 from vector<1x1x1xf32>
    %146 = arith.mulf %138, %138 : vector<8x4xf32>
    %cst_42 = arith.constant dense<0.000000e+00> : vector<8xf32>
    %147 = vector.multi_reduction <add>, %146, %cst_42 [1] : vector<8x4xf32> to vector<8xf32>
    %148 = vector.shape_cast %147 : vector<8xf32> to vector<8x1xf32>
    %cst_43 = arith.constant -5.000000e-01 : f32
    %149 = vector.broadcast %cst_43 : f32 to vector<8x1xf32>
    %150 = arith.mulf %149, %148 : vector<8x1xf32>
    %cst_44 = arith.constant 3.67575407 : f32
    %151 = arith.addf %145, %cst_44 : f32
    %152 = vector.broadcast %151 : f32 to vector<8x1xf32>
    %153 = arith.subf %150, %152 : vector<8x1xf32>
    %cst_45 = arith.constant 1.41893852 : f32
    %154 = vector.broadcast %cst_45 : f32 to vector<1x4xf32>
    %155 = arith.addf %154, %136 : vector<1x4xf32>
    %156 = vector.shape_cast %155 : vector<1x4xf32> to vector<1x1x4xf32>
    %cst_46 = arith.constant dense<0.000000e+00> : vector<1xf32>
    %157 = vector.multi_reduction <add>, %156, %cst_46 [1, 2] : vector<1x1x4xf32> to vector<1xf32>
    %158 = vector.shape_cast %157 : vector<1xf32> to vector<1x1x1xf32>
    %159 = vector.extract %158[0, 0, 0] : f32 from vector<1x1x1xf32>
    %cst_47 = arith.constant 4.000000e+00 : f32
    %160 = arith.divf %159, %cst_47 : f32
    %cst_48 = arith.constant 0.000000e+00 : f32
    %161 = vector.broadcast %cst_48 : f32 to vector<8x1xf32>
    %162 = vector.broadcast %160 : f32 to vector<8x1xf32>
    %163 = arith.addf %161, %162 : vector<8x1xf32>
    %cst_49 = arith.constant 0.000000e+00 : f32
    %164 = vector.broadcast %cst_49 : f32 to vector<8x118xf32>
    %165 = tpu.concatenate %137, %141, %153, %163, %164 in 1 : vector<8x4xf32>, vector<8x4xf32>, vector<8x1xf32>, vector<8x1xf32>, vector<8x118xf32> -> vector<8x128xf32>
    %c0_50 = arith.constant 0 : index
    %c0_51 = arith.constant 0 : index
    %166 = vector.load %arg5[%c0_50, %c0_51] : memref<8x128xf32, #tpu.memory_space<vmem>>, vector<8x128xf32>
    tpu.vector_store %arg5[%c0_50, %c0_51], %165 {strides = array<i32>} : memref<8x128xf32, #tpu.memory_space<vmem>>, vector<8x128xf32>,
    return
  }
  func.func @transform_0(%arg0: i32) -> (i32, i32) {
    %c0_i32 = arith.constant 0 : i32
    %c0_i32_0 = arith.constant 0 : i32
    %c0_i32_1 = arith.constant 0 : i32
    return %c0_i32, %c0_i32_0 : i32, i32
  }
  func.func @transform_1(%arg0: i32) -> (i32, i32) {
    %c0_i32 = arith.constant 0 : i32
    %c0_i32_0 = arith.constant 0 : i32
    %c0_i32_1 = arith.constant 0 : i32
    return %c0_i32, %c0_i32_0 : i32, i32
  }
  func.func @transform_2(%arg0: i32) -> (i32, i32, i32) {
    %c0_i32 = arith.constant 0 : i32
    %c0_i32_0 = arith.constant 0 : i32
    %c0_i32_1 = arith.constant 0 : i32
    %c0_i32_2 = arith.constant 0 : i32
    return %c0_i32, %c0_i32_0, %c0_i32_1 : i32, i32, i32
  }
  func.func @transform_3(%arg0: i32) -> i32 {
    %c0_i32 = arith.constant 0 : i32
    %c0_i32_0 = arith.constant 0 : i32
    return %c0_i32 : i32
  }
  func.func @transform_4(%arg0: i32) -> (i32, i32) {
    %c0_i32 = arith.constant 0 : i32
    %c0_i32_0 = arith.constant 0 : i32
    %c0_i32_1 = arith.constant 0 : i32
    return %c0_i32, %c0_i32_0 : i32, i32
  }
}

</mosaic_0001>

<llo_original>
// kernel: tpu_custom_call.1
$region0: #{tpu_custom_call.1}
  #allocation0 [shape = 'u32[]', space=smem, size = 0x4, offset = 0x4, fixed_abs, tag = 'smem constant byte address 0x4 - core index']
  #allocation1 [shape = 'u32[144,128]{1,0:T(1,128)}', space=vmem, size = 0x12000, scoped, tag = 'internal scratch']
  #allocation2 [shape = 'f32[1]{0:T(128)S(6)}', space=smem, size = 0x200, scoped, tag = 'scoped memory for tpu_custom_call.1']
  %s0 = inlined_call_operand.hbm [shape: f32[8,128], index: 0, kind: input, shape index: {}]
  %s1 = inlined_call_operand.hbm [shape: f32[16,128], index: 1, kind: input, shape index: {}]
  %s2 = inlined_call_operand.hbm [shape: bf16[4,128,128], index: 2, kind: input, shape index: {}]
  %s3 = inlined_call_operand.<no memory space> [shape: f32[1], index: 3, kind: input, shape index: {}]
  %s4 = inlined_call_operand.hbm [shape: f32[8,128], index: 4, kind: output, shape index: {}]
  %s5 = sld [smem:[#allocation0]]
  $region38: #{tpu_custom_call.1} parent=0
    _
  %s7 = ssub.s32 1, %s5
  %s8 = scalar_select 0, %s7, %s5
  %9 = sst [smem:[#allocation2]] %s3
  $region1: #{tpu_custom_call.1} parent=0
    #allocation3 [shape = 'u8[4096]{0}', space=vmem, size = 0x1000, scoped, tag = 'input window, operand 0, single buffered']
    #allocation4 [shape = 's32[1]{0}', space=sflag, size = 0x4, scoped, tag = 'scoped memory for tpu_custom_call.1']
    #allocation5 [shape = 's32[1]{0}', space=sflag, size = 0x4, scoped, tag = 'scoped memory for tpu_custom_call.1']
    #allocation6 [shape = 'u8[8192]{0}', space=vmem, size = 0x2000, scoped, tag = 'input window, operand 1, single buffered']
    #allocation7 [shape = 's32[1]{0}', space=sflag, size = 0x4, scoped, tag = 'scoped memory for tpu_custom_call.1']
    #allocation8 [shape = 'u8[131072]{0}', space=vmem, size = 0x20000, scoped, tag = 'input window, operand 2, single buffered']
    #allocation9 [shape = 'u8[4096]{0}', space=vmem, size = 0x1000, scoped, tag = 'output window, operand 0, single buffered']
    %10 = vsyncpa [#allocation4], 0
    %11 = vsyncpa [#allocation7], 0
    %12 = vsyncpa [#allocation5], 0
    // Predicated region
    $region2: #{tpu_custom_call.1} parent=1 // pred_check
      _
    $region3: #{tpu_custom_call.1} parent=1 // pred_check_branch
      %14 = sbr.rel (0) target = $region5
    $region4: #{tpu_custom_call.1} parent=1 // pred_region
      %s16 = ssub.s32 128, 128
      %17 = vsyncadd [#allocation4], %s16
      %s19 = sshll.u32 [#allocation3], 4
      %s20 = int_to_ptr.vmem [resolvable:$true] %s19
      %22 = dma.hbm_to_vmem [thread:$0]  %s0, 128, %s20, [#allocation4]
    $region5: #{tpu_custom_call.1} parent=1 // pred_fallthru
      _
    // Predicated region
    $region6: #{tpu_custom_call.1} parent=1 // pred_check
      _
    $region7: #{tpu_custom_call.1} parent=1 // pred_check_branch
      %24 = sbr.rel (0) target = $region9
    $region8: #{tpu_custom_call.1} parent=1 // pred_region
      %s26 = ssub.s32 256, 256
      %27 = vsyncadd [#allocation7], %s26
      %s28 = sshll.u32 [#allocation6], 4
      %s29 = int_to_ptr.vmem [resolvable:$true] %s28
      %34 = dma.hbm_to_vmem [thread:$0]  %s1, 256, %s29, [#allocation7], 128, 128, 8
    $region9: #{tpu_custom_call.1} parent=1 // pred_fallthru
      _
    // Predicated region
    $region10: #{tpu_custom_call.1} parent=1 // pred_check
      _
    $region11: #{tpu_custom_call.1} parent=1 // pred_check_branch
      %36 = sbr.rel (0) target = $region13
    $region12: #{tpu_custom_call.1} parent=1 // pred_region
      %s38 = ssub.s32 4096, 4096
      %39 = vsyncadd [#allocation7], %s38
      %s40 = sshll.u32 [#allocation8], 4
      %s41 = int_to_ptr.vmem [resolvable:$true] %s40
      %46 = dma.hbm_to_vmem [thread:$0]  %s2, 4096, %s41, [#allocation7], 64, 64, 4
    $region13: #{tpu_custom_call.1} parent=1 // pred_fallthru
      _
    // Predicated region
    $region14: #{tpu_custom_call.1} parent=1 // pred_check
      _
    $region15: #{tpu_custom_call.1} parent=1 // pred_check_branch
      %48 = sbr.rel (0) target = $region17
    $region16: #{tpu_custom_call.1} parent=1 // pred_region
      _
    $region17: #{tpu_custom_call.1} parent=1 // pred_fallthru
      _
    // Predicated region
    $region18: #{tpu_custom_call.1} parent=1 // pred_check
      _
    $region19: #{tpu_custom_call.1} parent=1 // pred_check_branch
      %50 = sbr.rel (0) target = $region21
    $region20: #{tpu_custom_call.1} parent=1 // pred_region
      %51 = dma.done [#allocation4], 128
    $region21: #{tpu_custom_call.1} parent=1 // pred_fallthru
      _
    // Predicated region
    $region22: #{tpu_custom_call.1} parent=1 // pred_check
      _
    $region23: #{tpu_custom_call.1} parent=1 // pred_check_branch
      %53 = sbr.rel (0) target = $region25
    $region24: #{tpu_custom_call.1} parent=1 // pred_region
      %54 = dma.done [#allocation7], 256
    $region25: #{tpu_custom_call.1} parent=1 // pred_fallthru
      _
    // Predicated region
    $region26: #{tpu_custom_call.1} parent=1 // pred_check
      _
    $region27: #{tpu_custom_call.1} parent=1 // pred_check_branch
      %56 = sbr.rel (0) target = $region29
    $region28: #{tpu_custom_call.1} parent=1 // pred_region
      %57 = dma.done [#allocation7], 4096
    $region29: #{tpu_custom_call.1} parent=1 // pred_fallthru
      _
    %s59 = sld [smem:[#allocation2]]
    %v60 = vld [vmem:[#allocation3] sm:$0xff]
    %v61 = vld [vmem:[#allocation6] sm:$0xff]
    %v62 = vld [vmem:[#allocation6 + $0x8] sm:$0xff]
    %v63 = vrot.slane %v60, 4
    %v64 = vadd.f32 %v60, %v63
    %v65 = vrot.slane %v64, 2
    %v66 = vadd.f32 %v64, %v65
    %v67 = vrot.slane %v66, 1
    %v68 = vadd.f32 %v66, %v67
    %v69 = vrcp.pop 8.0
    %v70 = vmul.f32 %v68, %v69
    %v71 = vsub.f32 %v60, %v70
    %v72 = vmul.f32 %v71, %v71
    %v73 = vrot.slane %v72, 4
    %v74 = vadd.f32 %v72, %v73
    %v75 = vrot.slane %v74, 2
    %v76 = vadd.f32 %v74, %v75
    %v77 = vrot.slane %v76, 1
    %v78 = vadd.f32 %v76, %v77
    %v79 = vmul.f32 %v78, %v69
    %v80 = vadd.f32 %v79, 1e-05
    %v81 = vrsqrt.pop %v80
    %v82 = vmul.f32 %v61, %v81
    %v83 = vlaneseq
    %v84 = vshrl.u32 %v83, 7
    %v85 = vsub.s32 0, %v84
    %v86 = vrot.slane %v82, %v85
    %v87 = vmul.f32 %v71, %v86
    %v88 = vlaneseq
    %v89 = vshrl.u32 %v88, 7
    %v90 = vsub.s32 1, %v89
    %v91 = vrot.slane %v61, %v90
    %v92 = vadd.f32 %v87, %v91
    %v93 = vpack.c.bf16 %v92, %v92
    %v94 = vld [vmem:[#allocation8] sm:$0xf]
    %v95 = vld [vmem:[#allocation8 + $0x4] sm:$0xf]
    %v96 = vld [vmem:[#allocation8 + $0x8] sm:$0xf]
    %v97 = vld [vmem:[#allocation8 + $0xc] sm:$0xf]
    %v98 = vld [vmem:[#allocation8 + $0x10] sm:$0xf]
    %v99 = vld [vmem:[#allocation8 + $0x14] sm:$0xf]
    %v100 = vld [vmem:[#allocation8 + $0x18] sm:$0xf]
    %v101 = vld [vmem:[#allocation8 + $0x1c] sm:$0xf]
    %v102 = vld [vmem:[#allocation8 + $0x20] sm:$0xf]
    %v103 = vld [vmem:[#allocation8 + $0x24] sm:$0xf]
    %v104 = vld [vmem:[#allocation8 + $0x28] sm:$0xf]
    %v105 = vld [vmem:[#allocation8 + $0x2c] sm:$0xf]
    %v106 = vld [vmem:[#allocation8 + $0x30] sm:$0xf]
    %v107 = vld [vmem:[#allocation8 + $0x34] sm:$0xf]
    %v108 = vld [vmem:[#allocation8 + $0x38] sm:$0xf]
    %v109 = vld [vmem:[#allocation8 + $0x3c] sm:$0xf]
    %v110 = vlaneseq
    %v111 = vshrl.u32 %v110, 7
    %v112 = vsub.s32 2, %v111
    %v113 = vrot.slane %v61, %v112
    %v130 = vunpack.c.l.b16 %v94
    %v131 = vunpack.c.l.b16 %v95
    %v132 = vunpack.c.l.b16 %v96
    %v133 = vunpack.c.l.b16 %v97
    %v134 = vunpack.c.l.b16 %v98
    %v135 = vunpack.c.l.b16 %v99
    %v136 = vunpack.c.l.b16 %v100
    %v137 = vunpack.c.l.b16 %v101
    %v138 = vunpack.c.l.b16 %v102
    %v139 = vunpack.c.l.b16 %v103
    %v140 = vunpack.c.l.b16 %v104
    %v141 = vunpack.c.l.b16 %v105
    %v142 = vunpack.c.l.b16 %v106
    %v143 = vunpack.c.l.b16 %v107
    %v144 = vunpack.c.l.b16 %v108
    %v145 = vunpack.c.l.b16 %v109
    %v146 = vpack.c.b16 %v131, %v130
    %v147 = vpack.c.b16 %v133, %v132
    %v148 = vpack.c.b16 %v135, %v134
    %v149 = vpack.c.b16 %v137, %v136
    %v150 = vpack.c.b16 %v139, %v138
    %v151 = vpack.c.b16 %v141, %v140
    %v152 = vpack.c.b16 %v143, %v142
    %v153 = vpack.c.b16 %v145, %v144
    %162 = vmatprep.subr.bf16.mxu0 0
    %163 = vmatpush1.bf16.msra.mxu0 %v153
    %164 = vmatprep.subr.bf16.mxu0 0
    %165 = vmatpush1.bf16.msra.mxu0 %v152
    %166 = vmatprep.subr.bf16.mxu0 0
    %167 = vmatpush1.bf16.msra.mxu0 %v151
    %168 = vmatprep.subr.bf16.mxu0 0
    %169 = vmatpush1.bf16.msra.mxu0 %v150
    %170 = vmatprep.subr.bf16.mxu0 0
    %171 = vmatpush1.bf16.msra.mxu0 %v149
    %172 = vmatprep.subr.bf16.mxu0 0
    %173 = vmatpush1.bf16.msra.mxu0 %v148
    %174 = vmatprep.subr.bf16.mxu0 0
    %175 = vmatpush1.bf16.msra.mxu0 %v147
    %176 = vmatprep.subr.bf16.mxu0 0
    %177 = vmatpush1.bf16.msra.mxu0 %v146
    %178 = vmatprep.subr.bf16.mxu0 0
    %179 = vmatpush2.bf16.msra.mxu0 0
    %180 = vmatprep.subr.bf16.mxu0 0
    %181 = vmatpush2.bf16.msra.mxu0 0
    %182 = vmatprep.subr.bf16.mxu0 0
    %183 = vmatpush2.bf16.msra.mxu0 0
    %184 = vmatprep.subr.bf16.mxu0 0
    %185 = vmatpush2.bf16.msra.mxu0 0
    %186 = vmatprep.subr.bf16.mxu0 0
    %187 = vmatpush2.bf16.msra.mxu0 0
    %188 = vmatprep.subr.bf16.mxu0 0
    %189 = vmatpush2.bf16.msra.mxu0 0
    %190 = vmatprep.subr.bf16.mxu0 0
    %191 = vmatpush2.bf16.msra.mxu0 0
    %192 = vmatprep.subr.bf16.mxu0 0
    %193 = vmatpush2.bf16.msra.mxu0 0
    %194 = vmatprep.mubr.bf16.mxu0 0
    %195 = vmatmul.mubr.bf16.gmra.mxu0 %v93
    %v196 = vpop.f32.mrf.mxu0
    %v197 = vadd.f32 %v113, %v196
    %v198 = vpop.f32.mrf.mxu0
    %v199 = vpop.f32.mrf.mxu0
    %v200 = vpop.f32.mrf.mxu0
    %201 = vdwg.mxu0
    %vm202 = vcmp.gt.f32.partialorder %v197, 0.0
    %v203 = vstv %s59
    %v204 = vmul.f32 %v203, %v197
    %v205 = vsel %vm202, %v197, %v204
    %v206 = vrot.slane %v205, 4
    %v207 = vadd.f32 %v205, %v206
    %v208 = vrot.slane %v207, 2
    %v209 = vadd.f32 %v207, %v208
    %v210 = vrot.slane %v209, 1
    %v211 = vadd.f32 %v209, %v210
    %v212 = vmul.f32 %v211, %v69
    %v213 = vsub.f32 %v205, %v212
    %v214 = vmul.f32 %v213, %v213
    %v215 = vrot.slane %v214, 4
    %v216 = vadd.f32 %v214, %v215
    %v217 = vrot.slane %v216, 2
    %v218 = vadd.f32 %v216, %v217
    %v219 = vrot.slane %v218, 1
    %v220 = vadd.f32 %v218, %v219
    %v221 = vmul.f32 %v220, %v69
    %v222 = vadd.f32 %v221, 1e-05
    %v223 = vrsqrt.pop %v222
    %v224 = vmul.f32 %v61, %v223
    %v225 = vlaneseq
    %v226 = vshrl.u32 %v225, 7
    %v227 = vsub.s32 3, %v226
    %v228 = vrot.slane %v224, %v227
    %v229 = vmul.f32 %v213, %v228
    %v230 = vlaneseq
    %v231 = vshrl.u32 %v230, 7
    %v232 = vsub.s32 4, %v231
    %v233 = vrot.slane %v61, %v232
    %v234 = vadd.f32 %v229, %v233
    %v235 = vpack.c.bf16 %v234, %v234
    %s236 = scalar_lea.vmem [#allocation8], 64
    %v237 = vld [vmem:[%s236] sm:$0xf]
    %v238 = vld [vmem:[%s236 + $0x4] sm:$0xf]
    %v239 = vld [vmem:[%s236 + $0x8] sm:$0xf]
    %v240 = vld [vmem:[%s236 + $0xc] sm:$0xf]
    %v241 = vld [vmem:[%s236 + $0x10] sm:$0xf]
    %v242 = vld [vmem:[%s236 + $0x14] sm:$0xf]
    %v243 = vld [vmem:[%s236 + $0x18] sm:$0xf]
    %v244 = vld [vmem:[%s236 + $0x1c] sm:$0xf]
    %v245 = vld [vmem:[%s236 + $0x20] sm:$0xf]
    %v246 = vld [vmem:[%s236 + $0x24] sm:$0xf]
    %v247 = vld [vmem:[%s236 + $0x28] sm:$0xf]
    %v248 = vld [vmem:[%s236 + $0x2c] sm:$0xf]
    %v249 = vld [vmem:[%s236 + $0x30] sm:$0xf]
    %v250 = vld [vmem:[%s236 + $0x34] sm:$0xf]
    %v251 = vld [vmem:[%s236 + $0x38] sm:$0xf]
    %v252 = vld [vmem:[%s236 + $0x3c] sm:$0xf]
    %v253 = vlaneseq
    %v254 = vshrl.u32 %v253, 7
    %v255 = vsub.s32 5, %v254
    %v256 = vrot.slane %v61, %v255
    %v273 = vunpack.c.l.b16 %v237
    %v274 = vunpack.c.l.b16 %v238
    %v275 = vunpack.c.l.b16 %v239
    %v276 = vunpack.c.l.b16 %v240
    %v277 = vunpack.c.l.b16 %v241
    %v278 = vunpack.c.l.b16 %v242
    %v279 = vunpack.c.l.b16 %v243
    %v280 = vunpack.c.l.b16 %v244
    %v281 = vunpack.c.l.b16 %v245
    %v282 = vunpack.c.l.b16 %v246
    %v283 = vunpack.c.l.b16 %v247
    %v284 = vunpack.c.l.b16 %v248
    %v285 = vunpack.c.l.b16 %v249
    %v286 = vunpack.c.l.b16 %v250
    %v287 = vunpack.c.l.b16 %v251
    %v288 = vunpack.c.l.b16 %v252
    %v289 = vpack.c.b16 %v274, %v273
    %v290 = vpack.c.b16 %v276, %v275
    %v291 = vpack.c.b16 %v278, %v277
    %v292 = vpack.c.b16 %v280, %v279
    %v293 = vpack.c.b16 %v282, %v281
    %v294 = vpack.c.b16 %v284, %v283
    %v295 = vpack.c.b16 %v286, %v285
    %v296 = vpack.c.b16 %v288, %v287
    %305 = vmatprep.subr.bf16.mxu0 0
    %306 = vmatpush1.bf16.msra.mxu0 %v296
    %307 = vmatprep.subr.bf16.mxu0 0
    %308 = vmatpush1.bf16.msra.mxu0 %v295
    %309 = vmatprep.subr.bf16.mxu0 0
    %310 = vmatpush1.bf16.msra.mxu0 %v294
    %311 = vmatprep.subr.bf16.mxu0 0
    %312 = vmatpush1.bf16.msra.mxu0 %v293
    %313 = vmatprep.subr.bf16.mxu0 0
    %314 = vmatpush1.bf16.msra.mxu0 %v292
    %315 = vmatprep.subr.bf16.mxu0 0
    %316 = vmatpush1.bf16.msra.mxu0 %v291
    %317 = vmatprep.subr.bf16.mxu0 0
    %318 = vmatpush1.bf16.msra.mxu0 %v290
    %319 = vmatprep.subr.bf16.mxu0 0
    %320 = vmatpush1.bf16.msra.mxu0 %v289
    %321 = vmatprep.subr.bf16.mxu0 0
    %322 = vmatpush2.bf16.msra.mxu0 0
    %323 = vmatprep.subr.bf16.mxu0 0
    %324 = vmatpush2.bf16.msra.mxu0 0
    %325 = vmatprep.subr.bf16.mxu0 0
    %326 = vmatpush2.bf16.msra.mxu0 0
    %327 = vmatprep.subr.bf16.mxu0 0
    %328 = vmatpush2.bf16.msra.mxu0 0
    %329 = vmatprep.subr.bf16.mxu0 0
    %330 = vmatpush2.bf16.msra.mxu0 0
    %331 = vmatprep.subr.bf16.mxu0 0
    %332 = vmatpush2.bf16.msra.mxu0 0
    %333 = vmatprep.subr.bf16.mxu0 0
    %334 = vmatpush2.bf16.msra.mxu0 0
    %335 = vmatprep.subr.bf16.mxu0 0
    %336 = vmatpush2.bf16.msra.mxu0 0
    %337 = vmatprep.mubr.bf16.mxu0 0
    %338 = vmatmul.mubr.bf16.gmra.mxu0 %v235
    %v339 = vpop.f32.mrf.mxu0
    %v340 = vadd.f32 %v256, %v339
    %v341 = vpop.f32.mrf.mxu0
    %v342 = vpop.f32.mrf.mxu0
    %v343 = vpop.f32.mrf.mxu0
    %344 = vdwg.mxu0
    %vm345 = vcmp.gt.f32.partialorder %v340, 0.0
    %v346 = vmul.f32 %v203, %v340
    %v347 = vsel %vm345, %v340, %v346
    %v348 = vrot.slane %v347, 4
    %v349 = vadd.f32 %v347, %v348
    %v350 = vrot.slane %v349, 2
    %v351 = vadd.f32 %v349, %v350
    %v352 = vrot.slane %v351, 1
    %v353 = vadd.f32 %v351, %v352
    %v354 = vmul.f32 %v353, %v69
    %v355 = vsub.f32 %v347, %v354
    %v356 = vmul.f32 %v355, %v355
    %v357 = vrot.slane %v356, 4
    %v358 = vadd.f32 %v356, %v357
    %v359 = vrot.slane %v358, 2
    %v360 = vadd.f32 %v358, %v359
    %v361 = vrot.slane %v360, 1
    %v362 = vadd.f32 %v360, %v361
    %v363 = vmul.f32 %v362, %v69
    %v364 = vadd.f32 %v363, 1e-05
    %v365 = vrsqrt.pop %v364
    %v366 = vmul.f32 %v61, %v365
    %v367 = vlaneseq
    %v368 = vshrl.u32 %v367, 7
    %v369 = vsub.s32 6, %v368
    %v370 = vrot.slane %v366, %v369
    %v371 = vmul.f32 %v355, %v370
    %v372 = vlaneseq
    %v373 = vshrl.u32 %v372, 7
    %v374 = vsub.s32 7, %v373
    %v375 = vrot.slane %v61, %v374
    %v376 = vadd.f32 %v371, %v375
    %v377 = vpack.c.bf16 %v376, %v376
    %s378 = scalar_lea.vmem [#allocation8], 128
    %v379 = vld [vmem:[%s378] sm:$0xf]
    %v380 = vld [vmem:[%s378 + $0x4] sm:$0xf]
    %v381 = vld [vmem:[%s378 + $0x8] sm:$0xf]
    %v382 = vld [vmem:[%s378 + $0xc] sm:$0xf]
    %v383 = vld [vmem:[%s378 + $0x10] sm:$0xf]
    %v384 = vld [vmem:[%s378 + $0x14] sm:$0xf]
    %v385 = vld [vmem:[%s378 + $0x18] sm:$0xf]
    %v386 = vld [vmem:[%s378 + $0x1c] sm:$0xf]
    %v387 = vld [vmem:[%s378 + $0x20] sm:$0xf]
    %v388 = vld [vmem:[%s378 + $0x24] sm:$0xf]
    %v389 = vld [vmem:[%s378 + $0x28] sm:$0xf]
    %v390 = vld [vmem:[%s378 + $0x2c] sm:$0xf]
    %v391 = vld [vmem:[%s378 + $0x30] sm:$0xf]
    %v392 = vld [vmem:[%s378 + $0x34] sm:$0xf]
    %v393 = vld [vmem:[%s378 + $0x38] sm:$0xf]
    %v394 = vld [vmem:[%s378 + $0x3c] sm:$0xf]
    %v395 = vlaneseq
    %v396 = vshrl.u32 %v395, 7
    %v397 = vsub.s32 0, %v396
    %v398 = vrot.slane %v62, %v397
    %v415 = vunpack.c.l.b16 %v379
    %v416 = vunpack.c.l.b16 %v380
    %v417 = vunpack.c.l.b16 %v381
    %v418 = vunpack.c.l.b16 %v382
    %v419 = vunpack.c.l.b16 %v383
    %v420 = vunpack.c.l.b16 %v384
    %v421 = vunpack.c.l.b16 %v385
    %v422 = vunpack.c.l.b16 %v386
    %v423 = vunpack.c.l.b16 %v387
    %v424 = vunpack.c.l.b16 %v388
    %v425 = vunpack.c.l.b16 %v389
    %v426 = vunpack.c.l.b16 %v390
    %v427 = vunpack.c.l.b16 %v391
    %v428 = vunpack.c.l.b16 %v392
    %v429 = vunpack.c.l.b16 %v393
    %v430 = vunpack.c.l.b16 %v394
    %v431 = vpack.c.b16 %v416, %v415
    %v432 = vpack.c.b16 %v418, %v417
    %v433 = vpack.c.b16 %v420, %v419
    %v434 = vpack.c.b16 %v422, %v421
    %v435 = vpack.c.b16 %v424, %v423
    %v436 = vpack.c.b16 %v426, %v425
    %v437 = vpack.c.b16 %v428, %v427
    %v438 = vpack.c.b16 %v430, %v429
    %447 = vmatprep.subr.bf16.mxu0 0
    %448 = vmatpush1.bf16.msra.mxu0 %v438
    %449 = vmatprep.subr.bf16.mxu0 0
    %450 = vmatpush1.bf16.msra.mxu0 %v437
    %451 = vmatprep.subr.bf16.mxu0 0
    %452 = vmatpush1.bf16.msra.mxu0 %v436
    %453 = vmatprep.subr.bf16.mxu0 0
    %454 = vmatpush1.bf16.msra.mxu0 %v435
    %455 = vmatprep.subr.bf16.mxu0 0
    %456 = vmatpush1.bf16.msra.mxu0 %v434
    %457 = vmatprep.subr.bf16.mxu0 0
    %458 = vmatpush1.bf16.msra.mxu0 %v433
    %459 = vmatprep.subr.bf16.mxu0 0
    %460 = vmatpush1.bf16.msra.mxu0 %v432
    %461 = vmatprep.subr.bf16.mxu0 0
    %462 = vmatpush1.bf16.msra.mxu0 %v431
    %463 = vmatprep.subr.bf16.mxu0 0
    %464 = vmatpush2.bf16.msra.mxu0 0
    %465 = vmatprep.subr.bf16.mxu0 0
    %466 = vmatpush2.bf16.msra.mxu0 0
    %467 = vmatprep.subr.bf16.mxu0 0
    %468 = vmatpush2.bf16.msra.mxu0 0
    %469 = vmatprep.subr.bf16.mxu0 0
    %470 = vmatpush2.bf16.msra.mxu0 0
    %471 = vmatprep.subr.bf16.mxu0 0
    %472 = vmatpush2.bf16.msra.mxu0 0
    %473 = vmatprep.subr.bf16.mxu0 0
    %474 = vmatpush2.bf16.msra.mxu0 0
    %475 = vmatprep.subr.bf16.mxu0 0
    %476 = vmatpush2.bf16.msra.mxu0 0
    %477 = vmatprep.subr.bf16.mxu0 0
    %478 = vmatpush2.bf16.msra.mxu0 0
    %479 = vmatprep.mubr.bf16.mxu0 0
    %480 = vmatmul.mubr.bf16.gmra.mxu0 %v377
    %v481 = vpop.f32.mrf.mxu0
    %v482 = vadd.f32 %v398, %v481
    %v483 = vpop.f32.mrf.mxu0
    %v484 = vpop.f32.mrf.mxu0
    %v485 = vpop.f32.mrf.mxu0
    %486 = vdwg.mxu0
    %vm487 = vcmp.gt.f32.partialorder %v482, 0.0
    %v488 = vmul.f32 %v203, %v482
    %v489 = vsel %vm487, %v482, %v488
    %v490 = vrot.slane %v489, 4
    %v491 = vadd.f32 %v489, %v490
    %v492 = vrot.slane %v491, 2
    %v493 = vadd.f32 %v491, %v492
    %v494 = vrot.slane %v493, 1
    %v495 = vadd.f32 %v493, %v494
    %v496 = vmul.f32 %v495, %v69
    %v497 = vsub.f32 %v489, %v496
    %v498 = vmul.f32 %v497, %v497
    %v499 = vrot.slane %v498, 4
    %v500 = vadd.f32 %v498, %v499
    %v501 = vrot.slane %v500, 2
    %v502 = vadd.f32 %v500, %v501
    %v503 = vrot.slane %v502, 1
    %v504 = vadd.f32 %v502, %v503
    %v505 = vmul.f32 %v504, %v69
    %v506 = vadd.f32 %v505, 1e-05
    %v507 = vrsqrt.pop %v506
    %v508 = vmul.f32 %v62, %v507
    %v509 = vlaneseq
    %v510 = vshrl.u32 %v509, 7
    %v511 = vsub.s32 1, %v510
    %v512 = vrot.slane %v508, %v511
    %v513 = vmul.f32 %v497, %v512
    %v514 = vlaneseq
    %v515 = vshrl.u32 %v514, 7
    %v516 = vsub.s32 2, %v515
    %v517 = vrot.slane %v62, %v516
    %v518 = vadd.f32 %v513, %v517
    %v519 = vpack.c.bf16 %v518, %v518
    %s520 = scalar_lea.vmem [#allocation8], 192
    %v521 = vld [vmem:[%s520] sm:$0xf]
    %v522 = vld [vmem:[%s520 + $0x4] sm:$0xf]
    %v523 = vld [vmem:[%s520 + $0x8] sm:$0xf]
    %v524 = vld [vmem:[%s520 + $0xc] sm:$0xf]
    %v525 = vld [vmem:[%s520 + $0x10] sm:$0xf]
    %v526 = vld [vmem:[%s520 + $0x14] sm:$0xf]
    %v527 = vld [vmem:[%s520 + $0x18] sm:$0xf]
    %v528 = vld [vmem:[%s520 + $0x1c] sm:$0xf]
    %v529 = vld [vmem:[%s520 + $0x20] sm:$0xf]
    %v530 = vld [vmem:[%s520 + $0x24] sm:$0xf]
    %v531 = vld [vmem:[%s520 + $0x28] sm:$0xf]
    %v532 = vld [vmem:[%s520 + $0x2c] sm:$0xf]
    %v533 = vld [vmem:[%s520 + $0x30] sm:$0xf]
    %v534 = vld [vmem:[%s520 + $0x34] sm:$0xf]
    %v535 = vld [vmem:[%s520 + $0x38] sm:$0xf]
    %v536 = vld [vmem:[%s520 + $0x3c] sm:$0xf]
    %v537 = vlaneseq
    %v538 = vshrl.u32 %v537, 7
    %v539 = vsub.s32 3, %v538
    %v540 = vrot.slane %v62, %v539
    %v557 = vunpack.c.l.b16 %v521
    %v558 = vunpack.c.l.b16 %v522
    %v559 = vunpack.c.l.b16 %v523
    %v560 = vunpack.c.l.b16 %v524
    %v561 = vunpack.c.l.b16 %v525
    %v562 = vunpack.c.l.b16 %v526
    %v563 = vunpack.c.l.b16 %v527
    %v564 = vunpack.c.l.b16 %v528
    %v565 = vunpack.c.l.b16 %v529
    %v566 = vunpack.c.l.b16 %v530
    %v567 = vunpack.c.l.b16 %v531
    %v568 = vunpack.c.l.b16 %v532
    %v569 = vunpack.c.l.b16 %v533
    %v570 = vunpack.c.l.b16 %v534
    %v571 = vunpack.c.l.b16 %v535
    %v572 = vunpack.c.l.b16 %v536
    %v573 = vpack.c.b16 %v558, %v557
    %v574 = vpack.c.b16 %v560, %v559
    %v575 = vpack.c.b16 %v562, %v561
    %v576 = vpack.c.b16 %v564, %v563
    %v577 = vpack.c.b16 %v566, %v565
    %v578 = vpack.c.b16 %v568, %v567
    %v579 = vpack.c.b16 %v570, %v569
    %v580 = vpack.c.b16 %v572, %v571
    %589 = vmatprep.subr.bf16.mxu0 0
    %590 = vmatpush1.bf16.msra.mxu0 %v580
    %591 = vmatprep.subr.bf16.mxu0 0
    %592 = vmatpush1.bf16.msra.mxu0 %v579
    %593 = vmatprep.subr.bf16.mxu0 0
    %594 = vmatpush1.bf16.msra.mxu0 %v578
    %595 = vmatprep.subr.bf16.mxu0 0
    %596 = vmatpush1.bf16.msra.mxu0 %v577
    %597 = vmatprep.subr.bf16.mxu0 0
    %598 = vmatpush1.bf16.msra.mxu0 %v576
    %599 = vmatprep.subr.bf16.mxu0 0
    %600 = vmatpush1.bf16.msra.mxu0 %v575
    %601 = vmatprep.subr.bf16.mxu0 0
    %602 = vmatpush1.bf16.msra.mxu0 %v574
    %603 = vmatprep.subr.bf16.mxu0 0
    %604 = vmatpush1.bf16.msra.mxu0 %v573
    %605 = vmatprep.subr.bf16.mxu0 0
    %606 = vmatpush2.bf16.msra.mxu0 0
    %607 = vmatprep.subr.bf16.mxu0 0
    %608 = vmatpush2.bf16.msra.mxu0 0
    %609 = vmatprep.subr.bf16.mxu0 0
    %610 = vmatpush2.bf16.msra.mxu0 0
    %611 = vmatprep.subr.bf16.mxu0 0
    %612 = vmatpush2.bf16.msra.mxu0 0
    %613 = vmatprep.subr.bf16.mxu0 0
    %614 = vmatpush2.bf16.msra.mxu0 0
    %615 = vmatprep.subr.bf16.mxu0 0
    %616 = vmatpush2.bf16.msra.mxu0 0
    %617 = vmatprep.subr.bf16.mxu0 0
    %618 = vmatpush2.bf16.msra.mxu0 0
    %619 = vmatprep.subr.bf16.mxu0 0
    %620 = vmatpush2.bf16.msra.mxu0 0
    %621 = vmatprep.mubr.bf16.mxu0 0
    %622 = vmatmul.mubr.bf16.gmra.mxu0 %v519
    %v623 = vpop.f32.mrf.mxu0
    %v624 = vadd.f32 %v540, %v623
    %v625 = vpop.f32.mrf.mxu0
    %v626 = vpop.f32.mrf.mxu0
    %v627 = vpop.f32.mrf.mxu0
    %628 = vdwg.mxu0
    %v629 = vtanh.pop %v624
    %v630 = vmax.f32 %v62, 0.05
    %v631 = vmin.f32 %v630, 0.5
    %v632 = vlog2.pop %v631
    %v633 = vmul.f32 %v632, 0.6931472
    %v634 = vlaneseq
    %v635 = vshrl.u32 %v634, 7
    %v636 = vsub.s32 4, %v635
    %v637 = vrot.slane %v631, %v636
    %639 = vrot.lane.b32.xlu0 %v637, 32
    %v640 = vpop.permute.xlu0 %639
    %v642 = vmul.f32 %v60, %v640
    %644 = vrot.lane.b32.xlu0 %v642, 96
    %v645 = vpop.permute.xlu0 %644
    %v647 = vadd.f32 %v629, %v645
    %v649 = vrot.slane %v633, 4
    %vm651 = vcmask 24576
    %v652 = vsel %vm651, %v649, 0.0
    %653 = vadd.xlane.f32.xlu0 %v652
    %v654 = vpop.xlane.xlu0 %653
    %v655 = vrot.slane %v654, 4
    %v656 = vadd.f32 %v654, %v655
    %v657 = vrot.slane %v656, 2
    %v658 = vadd.f32 %v656, %v657
    %v659 = vrot.slane %v658, 1
    %v660 = vadd.f32 %v658, %v659
    %s661 = vtos %v660
    %v662 = vmul.f32 %v60, %v60
    %664 = vrot.lane.b32.xlu0 %v662, 96
    %v665 = vpop.permute.xlu0 %664
    %vm667 = vcmask 31744
    %v668 = vsel %vm667, %v665, 0.0
    %669 = vadd.xlane.f32.xlu0 %v668
    %v670 = vpop.xlane.xlu0 %669
    %v671 = vmul.f32 %v670, -0.5
    %s672 = sadd.f32 %s661, 3.675754
    %v673 = vstv %s672
    %v674 = vsub.f32 %v671, %v673
    %v675 = vadd.f32 %v633, 1.4189385
    %v677 = vrot.slane %v675, 4
    %v679 = vsel %vm651, %v677, 0.0
    %680 = vadd.xlane.f32.xlu0 %v679
    %v681 = vpop.xlane.xlu0 %680
    %v682 = vrot.slane %v681, 4
    %v683 = vadd.f32 %v681, %v682
    %v684 = vrot.slane %v683, 2
    %v685 = vadd.f32 %v683, %v684
    %v686 = vrot.slane %v685, 1
    %v687 = vadd.f32 %v685, %v686
    %s688 = vtos %v687
    %v689 = vrcp.pop 4.0
    %s690 = vtos %v689
    %s691 = smul.f32 %s688, %s690
    %v692 = vstv %s691
    %v693 = vadd.f32 %v692, 0.0
    %695 = vrot.lane.b32.xlu0 %v647, 4
    %v696 = vpop.permute.xlu0 %695
    %v698 = vsel %vm667, %v629, %v696
    %vm699 = vcmask 64512
    %v700 = vsel %vm699, %v698, %v674
    %vm701 = vcmask 72704
    %v702 = vsel %vm701, %v700, %v693
    %vm703 = vcmask 80896
    %v704 = vsel %vm703, %v702, 0.0
    %705 = vst [vmem:[#allocation9] sm:$0xff] %v704
    // Predicated region
    $region30: #{tpu_custom_call.1} parent=1 // pred_check
      _
    $region31: #{tpu_custom_call.1} parent=1 // pred_check_branch
      %707 = sbr.rel (0) target = $region33
    $region32: #{tpu_custom_call.1} parent=1 // pred_region
      %s709 = ssub.s32 128, 128
      %710 = vsyncadd [#allocation5], %s709
      %s712 = sshll.u32 [#allocation9], 4
      %s713 = int_to_ptr.vmem [resolvable:$true] %s712
      %715 = dma.vmem_to_hbm [thread:$0]  %s713, 128, %s4, [#allocation5]
    $region33: #{tpu_custom_call.1} parent=1 // pred_fallthru
      _
    // Predicated region
    $region34: #{tpu_custom_call.1} parent=1 // pred_check
      _
    $region35: #{tpu_custom_call.1} parent=1 // pred_check_branch
      %717 = sbr.rel (0) target = $region37
    $region36: #{tpu_custom_call.1} parent=1 // pred_region
      %718 = dma.done [#allocation5], 128
    $region37: #{tpu_custom_call.1} parent=1 // pred_fallthru
      _
    %719 = vsyncpa [#allocation4], 1
    %720 = vsyncpa [#allocation7], 1
    %721 = vsyncpa [#allocation5], 1

</llo_original>
